<compile_context>
chip_gen: v7x
topology: tpu7x:2x2x1
jax: 0.10.0
libtpu: 0.0.40
codegen_flags: <defaults>
</compile_context>

<pallas_src>
import numpy as np
import jax
import jax.numpy as jnp
from jax.experimental import pallas as pl
from jax.experimental.pallas import tpu as pltpu


# ----------------------------------------------------------------------------
# Host-side helpers: adaptive-avg-pool expressed as a matrix
# ----------------------------------------------------------------------------
def _adaptive_pool_matrix(n_out, n_in):
    """(n_out, n_in) matrix reproducing nn.AdaptiveAvgPool along one axis:
    output i averages inputs [floor(i*n_in/n_out), ceil((i+1)*n_in/n_out))."""
    P = np.zeros((n_out, n_in), dtype=np.float32)
    for i in range(n_out):
        s = (i * n_in) // n_out
        e = -(-((i + 1) * n_in) // n_out)  # ceil
        P[i, s:e] = 1.0 / float(e - s)
    return P


def _pool_flatten_matrix(h, w, size):
    """(H*W, size*size) matrix: flattened (H,W) image @ M == flattened
    AdaptiveAvgPool2d((size, size)) output (row-major, matching torch.flatten)."""
    ph = _adaptive_pool_matrix(size, h)          # (size, H)
    pw = _adaptive_pool_matrix(size, w)          # (size, W)
    return np.kron(ph, pw).T.astype(np.float32)  # (H*W, size*size)


# ----------------------------------------------------------------------------
# Fused Pallas kernel: channel-mean -> pool(matmul) -> 3x (GEMM + bias + relu)
# ----------------------------------------------------------------------------
def _encoder_kernel(x_ref, pm_ref,
                    w1_ref, b1_ref, w2_ref, b2_ref, w3_ref, b3_ref,
                    o_ref):
    # x_ref : (TN, C, H*W)  one batch tile, full channel/spatial extent
    # pm_ref: (H*W, S*S)    adaptive-pool + flatten matrix
    # w*_ref: (in, out)     BN-folded linear weights; b*_ref: (1, out)
    xm = jnp.mean(x_ref[...].astype(jnp.float32), axis=1)            # (TN, H*W)
    h = jnp.dot(xm, pm_ref[...], preferred_element_type=jnp.float32)  # (TN, S*S)
    h = jnp.maximum(
        jnp.dot(h, w1_ref[...], preferred_element_type=jnp.float32) + b1_ref[...], 0.0)
    h = jnp.maximum(
        jnp.dot(h, w2_ref[...], preferred_element_type=jnp.float32) + b2_ref[...], 0.0)
    h = jnp.maximum(
        jnp.dot(h, w3_ref[...], preferred_element_type=jnp.float32) + b3_ref[...], 0.0)
    o_ref[...] = h.astype(o_ref.dtype)


def _encoder_forward(x, pm, folded, mi_units, size):
    """x: (N, C, H, W) -> (N, mi_units). `folded` = [(W_io, b_1o)] * 3."""
    n, c, h, w = x.shape
    hw = h * w
    ss = size * size
    x_flat = x.reshape(n, c, hw)                 # contiguous, no data movement

    # Batch tile: full batch if small, else 256 rows (multiple of 8).
    tn = n if n <= 256 else 256
    grid = (pl.cdiv(n, tn),)

    (w1, b1), (w2, b2), (w3, b3) = folded
    const2d = lambda i: (0, 0)

    return pl.pallas_call(
        _encoder_kernel,
        out_shape=jax.ShapeDtypeStruct((n, mi_units), jnp.float32),
        grid_spec=pltpu.PrefetchScalarGridSpec(
            num_scalar_prefetch=0,
            grid=grid,
            in_specs=[
                pl.BlockSpec((tn, c, hw), lambda i: (i, 0, 0)),   # x tile
                pl.BlockSpec((hw, ss), const2d),                  # pool matrix (resident)
                pl.BlockSpec((ss, mi_units), const2d),            # W1
                pl.BlockSpec((1, mi_units), const2d),             # b1
                pl.BlockSpec((mi_units, mi_units), const2d),      # W2
                pl.BlockSpec((1, mi_units), const2d),             # b2
                pl.BlockSpec((mi_units, mi_units), const2d),      # W3
                pl.BlockSpec((1, mi_units), const2d),             # b3
            ],
            out_specs=pl.BlockSpec((tn, mi_units), lambda i: (i, 0)),
        ),
        compiler_params=pltpu.CompilerParams(
            dimension_semantics=("parallel",)),
    )(x_flat, pm, w1, b1, w2, b2, w3, b3)


# ----------------------------------------------------------------------------
# LinearXEncoder module (parameters + BN folding + forward)
# ----------------------------------------------------------------------------
class LinearXEncoder:
    def __init__(self, mi_units, size=7, *, key):
        self.mi_units = mi_units
        self.size = size
        self._pm_cache = {}

        dims = [(size * size, mi_units), (mi_units, mi_units), (mi_units, mi_units)]
        keys = jax.random.split(key, 6 * len(dims))
        self.layers = []
        for li, (din, dout) in enumerate(dims):
            kw, kb, kg, kbe, km, kv = keys[6 * li:6 * li + 6]
            bound = 1.0 / float(np.sqrt(din))
            layer = dict(
                W=jax.random.uniform(kw, (dout, din), jnp.float32, -bound, bound),
                b=jax.random.uniform(kb, (dout,), jnp.float32, -bound, bound),
                # non-trivial BN stats/affine (as in a trained net) so the fold
                # is actually exercised
                gamma=jax.random.uniform(kg, (dout,), jnp.float32, 0.5, 1.5),
                beta=0.1 * jax.random.normal(kbe, (dout,), jnp.float32),
                rmean=0.1 * jax.random.normal(km, (dout,), jnp.float32),
                rvar=jax.random.uniform(kv, (dout,), jnp.float32, 0.5, 1.5),
                eps=1e-5,
            )
            self.layers.append(layer)

        # Fold eval-mode BatchNorm1d into the linear weights/bias (host-side, once).
        # TODO(synk): training-mode BN (batch statistics) is not represented here.
        self._folded = []
        for layer in self.layers:
            scale = layer["gamma"] / jnp.sqrt(layer["rvar"] + layer["eps"])  # (out,)
            w_io = (layer["W"] * scale[:, None]).T                            # (in, out)
            b_o = ((layer["b"] - layer["rmean"]) * scale + layer["beta"]).reshape(1, -1)
            self._folded.append((jnp.asarray(w_io, jnp.float32),
                                 jnp.asarray(b_o, jnp.float32)))
        # NOTE: drop_rate in the reference LinearSeq is accepted but never used
        # in its forward, so no dropout is applied here either.

    def _pool_matrix(self, h, w):
        key = (h, w)
        if key not in self._pm_cache:
            self._pm_cache[key] = jnp.asarray(_pool_flatten_matrix(h, w, self.size))
        return self._pm_cache[key]

    def forward(self, x):
        n, c, h, w = x.shape
        pm = self._pool_matrix(h, w)
        return _encoder_forward(x, pm, self._folded, self.mi_units, self.size)


# ----------------------------------------------------------------------------
# Pure-JAX reference (un-folded BN) for correctness checking
# ----------------------------------------------------------------------------
def _reference_forward(x, enc):
    n, c, h, w = x.shape
    xm = jnp.mean(x, axis=1, keepdims=True)                       # (N,1,H,W)
    ph = jnp.asarray(_adaptive_pool_matrix(enc.size, h))          # (S,H)
    pw = jnp.asarray(_adaptive_pool_matrix(enc.size, w))          # (S,W)
    pooled = jnp.einsum("ih,nchw,jw->ncij", ph, xm, pw)           # (N,1,S,S)
    z = pooled.reshape(n, -1)
    for layer in enc.layers:
        z = z @ layer["W"].T + layer["b"]
        z = (z - layer["rmean"]) / jnp.sqrt(layer["rvar"] + layer["eps"]) \
            * layer["gamma"] + layer["beta"]
        z = jnp.maximum(z, 0.0)
    return z


if __name__ == "__main__":
    key = jax.random.PRNGKey(0)
    kx, kp = jax.random.split(key)

    # NCHW input: batch=2, channels=4, spatial=16x16; mi_units=32, size=7
    x = jax.random.normal(kx, (2, 4, 16, 16), jnp.float32)
    enc = LinearXEncoder(mi_units=32, size=7, key=kp)

    out = enc.forward(x)
    out = jax.block_until_ready(out)
    assert out.shape == (2, 32), out.shape

    ref = jax.block_until_ready(_reference_forward(x, enc))
    err = float(np.max(np.abs(np.asarray(out) - np.asarray(ref))))
    assert np.allclose(np.asarray(out), np.asarray(ref), atol=1e-4, rtol=1e-4), err

    print("KERNEL_OK")
</pallas_src>

<mosaic_0001>
module attributes {stable_mosaic.version = 11 : i64} {
  func.func @_encoder_kernel(%arg0: i32, %arg1: memref<2x4x256xf32, #tpu.memory_space<vmem>>, %arg2: memref<256x49xf32, #tpu.memory_space<vmem>>, %arg3: memref<49x32xf32, #tpu.memory_space<vmem>>, %arg4: memref<1x32xf32, #tpu.memory_space<vmem>>, %arg5: memref<32x32xf32, #tpu.memory_space<vmem>>, %arg6: memref<1x32xf32, #tpu.memory_space<vmem>>, %arg7: memref<32x32xf32, #tpu.memory_space<vmem>>, %arg8: memref<1x32xf32, #tpu.memory_space<vmem>>, %arg9: memref<2x32xf32, #tpu.memory_space<vmem>>) attributes {dimension_semantics = [#tpu.dimension_semantics<parallel>], iteration_bounds = array<i64: 1>, scalar_prefetch = 0 : i64, scratch_operands = 0 : i64, tpu.core_type = #tpu.core_type<tc>, window_params = [{transform_indices = @transform_0, window_bounds = array<i64: 2, 4, 256>}, {pipeline_mode = #tpu.pipeline_mode<synchronous>, transform_indices = @transform_1, window_bounds = array<i64: 256, 49>}, {pipeline_mode = #tpu.pipeline_mode<synchronous>, transform_indices = @transform_2, window_bounds = array<i64: 49, 32>}, {pipeline_mode = #tpu.pipeline_mode<synchronous>, transform_indices = @transform_3, window_bounds = array<i64: 1, 32>}, {pipeline_mode = #tpu.pipeline_mode<synchronous>, transform_indices = @transform_4, window_bounds = array<i64: 32, 32>}, {pipeline_mode = #tpu.pipeline_mode<synchronous>, transform_indices = @transform_5, window_bounds = array<i64: 1, 32>}, {pipeline_mode = #tpu.pipeline_mode<synchronous>, transform_indices = @transform_6, window_bounds = array<i64: 32, 32>}, {pipeline_mode = #tpu.pipeline_mode<synchronous>, transform_indices = @transform_7, window_bounds = array<i64: 1, 32>}, {transform_indices = @transform_8, window_bounds = array<i64: 2, 32>}]} {
    %c0 = arith.constant 0 : index
    %c0_0 = arith.constant 0 : index
    %c0_1 = arith.constant 0 : index
    %0 = vector.load %arg1[%c0, %c0_0, %c0_1] : memref<2x4x256xf32, #tpu.memory_space<vmem>>, vector<2x4x256xf32>
    %cst = arith.constant dense<0.000000e+00> : vector<2x256xf32>
    %1 = vector.multi_reduction <add>, %0, %cst [1] : vector<2x4x256xf32> to vector<2x256xf32>
    %cst_2 = arith.constant 4.000000e+00 : f32
    %2 = vector.broadcast %cst_2 : f32 to vector<2x256xf32>
    %3 = arith.divf %1, %2 : vector<2x256xf32>
    %c0_3 = arith.constant 0 : index
    %c0_4 = arith.constant 0 : index
    %4 = vector.load %arg2[%c0_3, %c0_4] : memref<256x49xf32, #tpu.memory_space<vmem>>, vector<256x49xf32>
    %cst_5 = arith.constant dense<0.000000e+00> : vector<2x49xf32>
    %5 = tpu.matmul %3, %4, %cst_5 {dimension_numbers = #tpu.dot_dimension_numbers<[1], [0], [0], [1], [0, 0, 1, 1], [], []>} : vector<2x256xf32>, vector<256x49xf32>, vector<2x49xf32> -> vector<2x49xf32>
    %c0_6 = arith.constant 0 : index
    %c0_7 = arith.constant 0 : index
    %6 = vector.load %arg3[%c0_6, %c0_7] : memref<49x32xf32, #tpu.memory_space<vmem>>, vector<49x32xf32>
    %cst_8 = arith.constant dense<0.000000e+00> : vector<2x32xf32>
    %7 = tpu.matmul %5, %6, %cst_8 {dimension_numbers = #tpu.dot_dimension_numbers<[1], [0], [0], [1], [0, 0, 1, 1], [], []>} : vector<2x49xf32>, vector<49x32xf32>, vector<2x32xf32> -> vector<2x32xf32>
    %c0_9 = arith.constant 0 : index
    %c0_10 = arith.constant 0 : index
    %8 = vector.load %arg4[%c0_9, %c0_10] : memref<1x32xf32, #tpu.memory_space<vmem>>, vector<1x32xf32>
    %9 = vector.broadcast %8 : vector<1x32xf32> to vector<2x32xf32>
    %10 = arith.addf %7, %9 : vector<2x32xf32>
    %cst_11 = arith.constant 0.000000e+00 : f32
    %11 = vector.broadcast %cst_11 : f32 to vector<2x32xf32>
    %12 = arith.maximumf %10, %11 : vector<2x32xf32>
    %c0_12 = arith.constant 0 : index
    %c0_13 = arith.constant 0 : index
    %13 = vector.load %arg5[%c0_12, %c0_13] : memref<32x32xf32, #tpu.memory_space<vmem>>, vector<32x32xf32>
    %cst_14 = arith.constant dense<0.000000e+00> : vector<2x32xf32>
    %14 = tpu.matmul %12, %13, %cst_14 {dimension_numbers = #tpu.dot_dimension_numbers<[1], [0], [0], [1], [0, 0, 1, 1], [], []>} : vector<2x32xf32>, vector<32x32xf32>, vector<2x32xf32> -> vector<2x32xf32>
    %c0_15 = arith.constant 0 : index
    %c0_16 = arith.constant 0 : index
    %15 = vector.load %arg6[%c0_15, %c0_16] : memref<1x32xf32, #tpu.memory_space<vmem>>, vector<1x32xf32>
    %16 = vector.broadcast %15 : vector<1x32xf32> to vector<2x32xf32>
    %17 = arith.addf %14, %16 : vector<2x32xf32>
    %cst_17 = arith.constant 0.000000e+00 : f32
    %18 = vector.broadcast %cst_17 : f32 to vector<2x32xf32>
    %19 = arith.maximumf %17, %18 : vector<2x32xf32>
    %c0_18 = arith.constant 0 : index
    %c0_19 = arith.constant 0 : index
    %20 = vector.load %arg7[%c0_18, %c0_19] : memref<32x32xf32, #tpu.memory_space<vmem>>, vector<32x32xf32>
    %cst_20 = arith.constant dense<0.000000e+00> : vector<2x32xf32>
    %21 = tpu.matmul %19, %20, %cst_20 {dimension_numbers = #tpu.dot_dimension_numbers<[1], [0], [0], [1], [0, 0, 1, 1], [], []>} : vector<2x32xf32>, vector<32x32xf32>, vector<2x32xf32> -> vector<2x32xf32>
    %c0_21 = arith.constant 0 : index
    %c0_22 = arith.constant 0 : index
    %22 = vector.load %arg8[%c0_21, %c0_22] : memref<1x32xf32, #tpu.memory_space<vmem>>, vector<1x32xf32>
    %23 = vector.broadcast %22 : vector<1x32xf32> to vector<2x32xf32>
    %24 = arith.addf %21, %23 : vector<2x32xf32>
    %cst_23 = arith.constant 0.000000e+00 : f32
    %25 = vector.broadcast %cst_23 : f32 to vector<2x32xf32>
    %26 = arith.maximumf %24, %25 : vector<2x32xf32>
    %c0_24 = arith.constant 0 : index
    %c0_25 = arith.constant 0 : index
    %27 = vector.load %arg9[%c0_24, %c0_25] : memref<2x32xf32, #tpu.memory_space<vmem>>, vector<2x32xf32>
    tpu.vector_store %arg9[%c0_24, %c0_25], %26 {strides = array<i32>} : memref<2x32xf32, #tpu.memory_space<vmem>>, vector<2x32xf32>,
    return
  }
  func.func @transform_0(%arg0: i32) -> (i32, i32, i32) {
    %c0_i32 = arith.constant 0 : i32
    %c0_i32_0 = arith.constant 0 : i32
    %c0_i32_1 = arith.constant 0 : i32
    return %arg0, %c0_i32, %c0_i32_0 : i32, i32, i32
  }
  func.func @transform_1(%arg0: i32) -> (i32, i32) {
    %c0_i32 = arith.constant 0 : i32
    %c0_i32_0 = arith.constant 0 : i32
    %c0_i32_1 = arith.constant 0 : i32
    return %c0_i32, %c0_i32_0 : i32, i32
  }
  func.func @transform_2(%arg0: i32) -> (i32, i32) {
    %c0_i32 = arith.constant 0 : i32
    %c0_i32_0 = arith.constant 0 : i32
    %c0_i32_1 = arith.constant 0 : i32
    return %c0_i32, %c0_i32_0 : i32, i32
  }
  func.func @transform_3(%arg0: i32) -> (i32, i32) {
    %c0_i32 = arith.constant 0 : i32
    %c0_i32_0 = arith.constant 0 : i32
    %c0_i32_1 = arith.constant 0 : i32
    return %c0_i32, %c0_i32_0 : i32, i32
  }
  func.func @transform_4(%arg0: i32) -> (i32, i32) {
    %c0_i32 = arith.constant 0 : i32
    %c0_i32_0 = arith.constant 0 : i32
    %c0_i32_1 = arith.constant 0 : i32
    return %c0_i32, %c0_i32_0 : i32, i32
  }
  func.func @transform_5(%arg0: i32) -> (i32, i32) {
    %c0_i32 = arith.constant 0 : i32
    %c0_i32_0 = arith.constant 0 : i32
    %c0_i32_1 = arith.constant 0 : i32
    return %c0_i32, %c0_i32_0 : i32, i32
  }
  func.func @transform_6(%arg0: i32) -> (i32, i32) {
    %c0_i32 = arith.constant 0 : i32
    %c0_i32_0 = arith.constant 0 : i32
    %c0_i32_1 = arith.constant 0 : i32
    return %c0_i32, %c0_i32_0 : i32, i32
  }
  func.func @transform_7(%arg0: i32) -> (i32, i32) {
    %c0_i32 = arith.constant 0 : i32
    %c0_i32_0 = arith.constant 0 : i32
    %c0_i32_1 = arith.constant 0 : i32
    return %c0_i32, %c0_i32_0 : i32, i32
  }
  func.func @transform_8(%arg0: i32) -> (i32, i32) {
    %c0_i32 = arith.constant 0 : i32
    %c0_i32_0 = arith.constant 0 : i32
    return %arg0, %c0_i32 : i32, i32
  }
}

</mosaic_0001>

<llo_original>
// kernel: tpu_custom_call.1
$region0: #{tpu_custom_call.1}
  #allocation0 [shape = 'u32[]', space=smem, size = 0x4, offset = 0x4, fixed_abs, tag = 'smem constant byte address 0x4 - core index']
  #allocation1 [shape = 'u32[144,128]{1,0:T(1,128)}', space=vmem, size = 0x12000, scoped, tag = 'internal scratch']
  %s0 = inlined_call_operand.vmem [shape: f32[2,4,256], index: 0, kind: input, shape index: {}]
  %s1 = inlined_call_operand.vmem [shape: f32[256,49], index: 1, kind: input, shape index: {}]
  %s2 = inlined_call_operand.vmem [shape: f32[49,32], index: 2, kind: input, shape index: {}]
  %s3 = inlined_call_operand.vmem [shape: f32[1,32], index: 3, kind: input, shape index: {}]
  %s4 = inlined_call_operand.vmem [shape: f32[32,32], index: 4, kind: input, shape index: {}]
  %s5 = inlined_call_operand.vmem [shape: f32[1,32], index: 5, kind: input, shape index: {}]
  %s6 = inlined_call_operand.vmem [shape: f32[32,32], index: 6, kind: input, shape index: {}]
  %s7 = inlined_call_operand.vmem [shape: f32[1,32], index: 7, kind: input, shape index: {}]
  %s8 = inlined_call_operand.hbm [shape: f32[2,32], index: 8, kind: output, shape index: {}]
  %s9 = sld [smem:[#allocation0]]
  $region42: #{tpu_custom_call.1} parent=0
    _
  %s11 = ssub.s32 1, %s9
  %s12 = scalar_select 0, %s11, %s9
  $region1: #{tpu_custom_call.1} parent=0
    #allocation2 [shape = 'u8[1024]{0}', space=vmem, size = 0x400, scoped, tag = 'output window, operand 0, single buffered']
    #allocation3 [shape = 's32[1]{0}', space=sflag, size = 0x4, scoped, tag = 'scoped memory for tpu_custom_call.1']
    %13 = vsyncpa [#allocation3], 0
    // Predicated region
    $region2: #{tpu_custom_call.1} parent=1 // pred_check
      _
    $region3: #{tpu_custom_call.1} parent=1 // pred_check_branch
      %15 = sbr.rel (0) target = $region5
    $region4: #{tpu_custom_call.1} parent=1 // pred_region
      _
    $region5: #{tpu_custom_call.1} parent=1 // pred_fallthru
      _
    // Predicated region
    $region6: #{tpu_custom_call.1} parent=1 // pred_check
      _
    $region7: #{tpu_custom_call.1} parent=1 // pred_check_branch
      %17 = sbr.rel (0) target = $region9
    $region8: #{tpu_custom_call.1} parent=1 // pred_region
      _
    $region9: #{tpu_custom_call.1} parent=1 // pred_fallthru
      _
    // Predicated region
    $region10: #{tpu_custom_call.1} parent=1 // pred_check
      _
    $region11: #{tpu_custom_call.1} parent=1 // pred_check_branch
      %19 = sbr.rel (0) target = $region13
    $region12: #{tpu_custom_call.1} parent=1 // pred_region
      _
    $region13: #{tpu_custom_call.1} parent=1 // pred_fallthru
      _
    // Predicated region
    $region14: #{tpu_custom_call.1} parent=1 // pred_check
      _
    $region15: #{tpu_custom_call.1} parent=1 // pred_check_branch
      %21 = sbr.rel (0) target = $region17
    $region16: #{tpu_custom_call.1} parent=1 // pred_region
      _
    $region17: #{tpu_custom_call.1} parent=1 // pred_fallthru
      _
    // Predicated region
    $region18: #{tpu_custom_call.1} parent=1 // pred_check
      _
    $region19: #{tpu_custom_call.1} parent=1 // pred_check_branch
      %23 = sbr.rel (0) target = $region21
    $region20: #{tpu_custom_call.1} parent=1 // pred_region
      _
    $region21: #{tpu_custom_call.1} parent=1 // pred_fallthru
      _
    // Predicated region
    $region22: #{tpu_custom_call.1} parent=1 // pred_check
      _
    $region23: #{tpu_custom_call.1} parent=1 // pred_check_branch
      %25 = sbr.rel (0) target = $region25
    $region24: #{tpu_custom_call.1} parent=1 // pred_region
      _
    $region25: #{tpu_custom_call.1} parent=1 // pred_fallthru
      _
    // Predicated region
    $region26: #{tpu_custom_call.1} parent=1 // pred_check
      _
    $region27: #{tpu_custom_call.1} parent=1 // pred_check_branch
      %27 = sbr.rel (0) target = $region29
    $region28: #{tpu_custom_call.1} parent=1 // pred_region
      _
    $region29: #{tpu_custom_call.1} parent=1 // pred_fallthru
      _
    // Predicated region
    $region30: #{tpu_custom_call.1} parent=1 // pred_check
      _
    $region31: #{tpu_custom_call.1} parent=1 // pred_check_branch
      %29 = sbr.rel (0) target = $region33
    $region32: #{tpu_custom_call.1} parent=1 // pred_region
      _
    $region33: #{tpu_custom_call.1} parent=1 // pred_fallthru
      _
    %v30 = vld [vmem:[%s0] sm:$0xff]
    %v31 = vld [vmem:[%s0 + $0x8] sm:$0xff]
    %v34 = vcombine.high %v30, %v30
    %v35 = vcombine.high %v31, %v31
    %vm38 = vcmask 1043456
    %v39 = vsel %vm38, %v30, 0.0
    %v40 = vrot.slane %v39, 4
    %v41 = vadd.f32 %v39, %v40
    %v42 = vrot.slane %v41, 2
    %v43 = vadd.f32 %v41, %v42
    %v44 = vrot.slane %v43, 1
    %v45 = vadd.f32 %v43, %v44
    %v46 = vsel %vm38, %v34, 0.0
    %v47 = vrot.slane %v46, 4
    %v48 = vadd.f32 %v46, %v47
    %v49 = vrot.slane %v48, 2
    %v50 = vadd.f32 %v48, %v49
    %v51 = vrot.slane %v50, 1
    %v52 = vadd.f32 %v50, %v51
    %v53 = vsel %vm38, %v31, 0.0
    %v54 = vrot.slane %v53, 4
    %v55 = vadd.f32 %v53, %v54
    %v56 = vrot.slane %v55, 2
    %v57 = vadd.f32 %v55, %v56
    %v58 = vrot.slane %v57, 1
    %v59 = vadd.f32 %v57, %v58
    %v60 = vsel %vm38, %v35, 0.0
    %v61 = vrot.slane %v60, 4
    %v62 = vadd.f32 %v60, %v61
    %v63 = vrot.slane %v62, 2
    %v64 = vadd.f32 %v62, %v63
    %v65 = vrot.slane %v64, 1
    %v66 = vadd.f32 %v64, %v65
    %v67 = vrcp.pop 4.0
    %v68 = vmul.f32 %v45, %v67
    %v69 = vmul.f32 %v52, %v67
    %v70 = vmul.f32 %v59, %v67
    %v71 = vmul.f32 %v66, %v67
    %v72 = vld [vmem:[%s1] sm:$0xff]
    %v73 = vld [vmem:[%s1 + $0x8] sm:$0xff]
    %v74 = vld [vmem:[%s1 + $0x10] sm:$0xff]
    %v75 = vld [vmem:[%s1 + $0x18] sm:$0xff]
    %v76 = vld [vmem:[%s1 + $0x20] sm:$0xff]
    %v77 = vld [vmem:[%s1 + $0x28] sm:$0xff]
    %v78 = vld [vmem:[%s1 + $0x30] sm:$0xff]
    %v79 = vld [vmem:[%s1 + $0x38] sm:$0xff]
    %v80 = vld [vmem:[%s1 + $0x40] sm:$0xff]
    %v81 = vld [vmem:[%s1 + $0x48] sm:$0xff]
    %v82 = vld [vmem:[%s1 + $0x50] sm:$0xff]
    %v83 = vld [vmem:[%s1 + $0x58] sm:$0xff]
    %v84 = vld [vmem:[%s1 + $0x60] sm:$0xff]
    %v85 = vld [vmem:[%s1 + $0x68] sm:$0xff]
    %v86 = vld [vmem:[%s1 + $0x70] sm:$0xff]
    %v87 = vld [vmem:[%s1 + $0x78] sm:$0xff]
    %v88 = vld [vmem:[%s1 + $0x80] sm:$0xff]
    %v89 = vld [vmem:[%s1 + $0x88] sm:$0xff]
    %v90 = vld [vmem:[%s1 + $0x90] sm:$0xff]
    %v91 = vld [vmem:[%s1 + $0x98] sm:$0xff]
    %v92 = vld [vmem:[%s1 + $0xa0] sm:$0xff]
    %v93 = vld [vmem:[%s1 + $0xa8] sm:$0xff]
    %v94 = vld [vmem:[%s1 + $0xb0] sm:$0xff]
    %v95 = vld [vmem:[%s1 + $0xb8] sm:$0xff]
    %v96 = vld [vmem:[%s1 + $0xc0] sm:$0xff]
    %v97 = vld [vmem:[%s1 + $0xc8] sm:$0xff]
    %v98 = vld [vmem:[%s1 + $0xd0] sm:$0xff]
    %v99 = vld [vmem:[%s1 + $0xd8] sm:$0xff]
    %v100 = vld [vmem:[%s1 + $0xe0] sm:$0xff]
    %v101 = vld [vmem:[%s1 + $0xe8] sm:$0xff]
    %v102 = vld [vmem:[%s1 + $0xf0] sm:$0xff]
    %v103 = vld [vmem:[%s1 + $0xf8] sm:$0xff]
    %vm108 = vcmask 1041409
    %v109 = vsel %vm108, %v70, %v68
    %v110 = vsel %vm108, %v71, %v69
    %113 = vmatprep.subr.mxu0 0.0
    %114 = vmatpush1.msra.mxu0 %v72
    %115 = vmatprep.subr.mxu0 0.0
    %116 = vmatpush1.msra.mxu0 %v73
    %117 = vmatprep.subr.mxu0 0.0
    %118 = vmatpush1.msra.mxu0 %v74
    %119 = vmatprep.subr.mxu0 0.0
    %120 = vmatpush1.msra.mxu0 %v75
    %121 = vmatprep.subr.mxu0 0.0
    %122 = vmatpush1.msra.mxu0 %v76
    %123 = vmatprep.subr.mxu0 0.0
    %124 = vmatpush1.msra.mxu0 %v77
    %125 = vmatprep.subr.mxu0 0.0
    %126 = vmatpush1.msra.mxu0 %v78
    %127 = vmatprep.subr.mxu0 0.0
    %128 = vmatpush1.msra.mxu0 %v79
    %129 = vmatprep.subr.mxu0 0.0
    %130 = vmatpush1.msra.mxu0 %v80
    %131 = vmatprep.subr.mxu0 0.0
    %132 = vmatpush1.msra.mxu0 %v81
    %133 = vmatprep.subr.mxu0 0.0
    %134 = vmatpush1.msra.mxu0 %v82
    %135 = vmatprep.subr.mxu0 0.0
    %136 = vmatpush1.msra.mxu0 %v83
    %137 = vmatprep.subr.mxu0 0.0
    %138 = vmatpush1.msra.mxu0 %v84
    %139 = vmatprep.subr.mxu0 0.0
    %140 = vmatpush1.msra.mxu0 %v85
    %141 = vmatprep.subr.mxu0 0.0
    %142 = vmatpush1.msra.mxu0 %v86
    %143 = vmatprep.subr.mxu0 0.0
    %144 = vmatpush1.msra.mxu0 %v87
    %145 = vmatprep.subr.mxu0 0.0
    %146 = vmatpush1.msra.mxu0 %v88
    %147 = vmatprep.subr.mxu0 0.0
    %148 = vmatpush1.msra.mxu0 %v89
    %149 = vmatprep.subr.mxu0 0.0
    %150 = vmatpush1.msra.mxu0 %v90
    %151 = vmatprep.subr.mxu0 0.0
    %152 = vmatpush1.msra.mxu0 %v91
    %153 = vmatprep.subr.mxu0 0.0
    %154 = vmatpush1.msra.mxu0 %v92
    %155 = vmatprep.subr.mxu0 0.0
    %156 = vmatpush1.msra.mxu0 %v93
    %157 = vmatprep.subr.mxu0 0.0
    %158 = vmatpush1.msra.mxu0 %v94
    %159 = vmatprep.subr.mxu0 0.0
    %160 = vmatpush1.msra.mxu0 %v95
    %161 = vmatprep.subr.mxu0 0.0
    %162 = vmatpush1.msra.mxu0 %v96
    %163 = vmatprep.subr.mxu0 0.0
    %164 = vmatpush1.msra.mxu0 %v97
    %165 = vmatprep.subr.mxu0 0.0
    %166 = vmatpush1.msra.mxu0 %v98
    %167 = vmatprep.subr.mxu0 0.0
    %168 = vmatpush1.msra.mxu0 %v99
    %169 = vmatprep.subr.mxu0 0.0
    %170 = vmatpush1.msra.mxu0 %v100
    %171 = vmatprep.subr.mxu0 0.0
    %172 = vmatpush1.msra.mxu0 %v101
    %173 = vmatprep.subr.mxu0 0.0
    %174 = vmatpush1.msra.mxu0 %v102
    %175 = vmatprep.subr.mxu0 0.0
    %176 = vmatpush1.msra.mxu0 %v103
    %177 = vmatprep.mubr.f32.mxu0 %v110
    %178 = vmatmul.mubr.f32.gmra.mrb[0].mxu0 %v109
    %v179 = vpop.f32.mrb[0].mxu0
    %v180 = vadd.f32 0.0, %v179
    %v181 = vpop.f32.mrb[0].mxu0
    %182 = vdwg.mxu0
    %v183 = vld [vmem:[%s2] sm:$0xff]
    %v184 = vld [vmem:[%s2 + $0x8] sm:$0xff]
    %v185 = vld [vmem:[%s2 + $0x10] sm:$0xff]
    %v186 = vld [vmem:[%s2 + $0x18] sm:$0xff]
    %v187 = vld [vmem:[%s2 + $0x20] sm:$0xff]
    %v188 = vld [vmem:[%s2 + $0x28] sm:$0xff]
    %v189 = vld [vmem:[%s2 + $0x30] sm:$0x1]
    %v190 = vld [vmem:[%s3] sm:$0x1]
    %v192 = vlaneseq
    %v193 = vshrl.u32 %v192, 7
    %v194 = vsub.s32 0, %v193
    %v195 = vrot.slane %v190, %v194
    %vm197 = vcmask 400384
    %v199 = vsel %vm197, %v180, 0
    %vm201 = vcmask 1040384
    %v203 = vsel %vm201, %v189, 0
    %205 = vmatprep.subr.mxu0 0.0
    %206 = vmatpush1.msra.mxu0 %v183
    %207 = vmatprep.subr.mxu0 0.0
    %208 = vmatpush1.msra.mxu0 %v184
    %209 = vmatprep.subr.mxu0 0.0
    %210 = vmatpush1.msra.mxu0 %v185
    %211 = vmatprep.subr.mxu0 0.0
    %212 = vmatpush1.msra.mxu0 %v186
    %213 = vmatprep.subr.mxu0 0.0
    %214 = vmatpush1.msra.mxu0 %v187
    %215 = vmatprep.subr.mxu0 0.0
    %216 = vmatpush1.msra.mxu0 %v188
    %217 = vmatprep.subr.mxu0 0.0
    %218 = vmatpush1.msra.mxu0 %v203
    %219 = vmatprep.subr.mxu0 0.0
    %220 = vmatpush1.msra.mxu0 0.0
    %221 = vmatprep.subr.mxu0 0.0
    %222 = vmatpush1.msra.mxu0 0.0
    %223 = vmatprep.subr.mxu0 0.0
    %224 = vmatpush1.msra.mxu0 0.0
    %225 = vmatprep.subr.mxu0 0.0
    %226 = vmatpush1.msra.mxu0 0.0
    %227 = vmatprep.subr.mxu0 0.0
    %228 = vmatpush1.msra.mxu0 0.0
    %229 = vmatprep.subr.mxu0 0.0
    %230 = vmatpush1.msra.mxu0 0.0
    %231 = vmatprep.subr.mxu0 0.0
    %232 = vmatpush1.msra.mxu0 0.0
    %233 = vmatprep.subr.mxu0 0.0
    %234 = vmatpush1.msra.mxu0 0.0
    %235 = vmatprep.subr.mxu0 0.0
    %236 = vmatpush1.msra.mxu0 0.0
    %237 = vmatprep.subr.mxu0 0.0
    %238 = vmatpush1.msra.mxu0 0.0
    %239 = vmatprep.subr.mxu0 0.0
    %240 = vmatpush1.msra.mxu0 0.0
    %241 = vmatprep.subr.mxu0 0.0
    %242 = vmatpush1.msra.mxu0 0.0
    %243 = vmatprep.subr.mxu0 0.0
    %244 = vmatpush1.msra.mxu0 0.0
    %245 = vmatprep.subr.mxu0 0.0
    %246 = vmatpush1.msra.mxu0 0.0
    %247 = vmatprep.subr.mxu0 0.0
    %248 = vmatpush1.msra.mxu0 0.0
    %249 = vmatprep.subr.mxu0 0.0
    %250 = vmatpush1.msra.mxu0 0.0
    %251 = vmatprep.subr.mxu0 0.0
    %252 = vmatpush1.msra.mxu0 0.0
    %253 = vmatprep.subr.mxu0 0.0
    %254 = vmatpush1.msra.mxu0 0.0
    %255 = vmatprep.subr.mxu0 0.0
    %256 = vmatpush1.msra.mxu0 0.0
    %257 = vmatprep.subr.mxu0 0.0
    %258 = vmatpush1.msra.mxu0 0.0
    %259 = vmatprep.subr.mxu0 0.0
    %260 = vmatpush1.msra.mxu0 0.0
    %261 = vmatprep.subr.mxu0 0.0
    %262 = vmatpush1.msra.mxu0 0.0
    %263 = vmatprep.subr.mxu0 0.0
    %264 = vmatpush1.msra.mxu0 0.0
    %265 = vmatprep.subr.mxu0 0.0
    %266 = vmatpush1.msra.mxu0 0.0
    %267 = vmatprep.subr.mxu0 0.0
    %268 = vmatpush1.msra.mxu0 0.0
    %269 = vmatprep.mubr.f32.mxu0 0.0
    %270 = vmatmul.mubr.f32.gmra.mrb[0].mxu0 %v199
    %v271 = vpop.f32.mrb[0].mxu0
    %v272 = vadd.f32 %v195, %v271
    %v273 = vpop.f32.mrb[0].mxu0
    %274 = vdwg.mxu0
    %v275 = vmax.f32 %v272, 0.0
    %v276 = vld [vmem:[%s4] sm:$0xff]
    %v277 = vld [vmem:[%s4 + $0x8] sm:$0xff]
    %v278 = vld [vmem:[%s4 + $0x10] sm:$0xff]
    %v279 = vld [vmem:[%s4 + $0x18] sm:$0xff]
    %v280 = vld [vmem:[%s5] sm:$0x1]
    %v282 = vlaneseq
    %v283 = vshrl.u32 %v282, 7
    %v284 = vsub.s32 0, %v283
    %v285 = vrot.slane %v280, %v284
    %vm287 = vcmask 261120
    %v289 = vsel %vm287, %v275, 0
    %291 = vmatprep.subr.mxu0 0.0
    %292 = vmatpush1.msra.mxu0 %v276
    %293 = vmatprep.subr.mxu0 0.0
    %294 = vmatpush1.msra.mxu0 %v277
    %295 = vmatprep.subr.mxu0 0.0
    %296 = vmatpush1.msra.mxu0 %v278
    %297 = vmatprep.subr.mxu0 0.0
    %298 = vmatpush1.msra.mxu0 %v279
    %299 = vmatprep.subr.mxu0 0.0
    %300 = vmatpush1.msra.mxu0 0.0
    %301 = vmatprep.subr.mxu0 0.0
    %302 = vmatpush1.msra.mxu0 0.0
    %303 = vmatprep.subr.mxu0 0.0
    %304 = vmatpush1.msra.mxu0 0.0
    %305 = vmatprep.subr.mxu0 0.0
    %306 = vmatpush1.msra.mxu0 0.0
    %307 = vmatprep.subr.mxu0 0.0
    %308 = vmatpush1.msra.mxu0 0.0
    %309 = vmatprep.subr.mxu0 0.0
    %310 = vmatpush1.msra.mxu0 0.0
    %311 = vmatprep.subr.mxu0 0.0
    %312 = vmatpush1.msra.mxu0 0.0
    %313 = vmatprep.subr.mxu0 0.0
    %314 = vmatpush1.msra.mxu0 0.0
    %315 = vmatprep.subr.mxu0 0.0
    %316 = vmatpush1.msra.mxu0 0.0
    %317 = vmatprep.subr.mxu0 0.0
    %318 = vmatpush1.msra.mxu0 0.0
    %319 = vmatprep.subr.mxu0 0.0
    %320 = vmatpush1.msra.mxu0 0.0
    %321 = vmatprep.subr.mxu0 0.0
    %322 = vmatpush1.msra.mxu0 0.0
    %323 = vmatprep.subr.mxu0 0.0
    %324 = vmatpush1.msra.mxu0 0.0
    %325 = vmatprep.subr.mxu0 0.0
    %326 = vmatpush1.msra.mxu0 0.0
    %327 = vmatprep.subr.mxu0 0.0
    %328 = vmatpush1.msra.mxu0 0.0
    %329 = vmatprep.subr.mxu0 0.0
    %330 = vmatpush1.msra.mxu0 0.0
    %331 = vmatprep.subr.mxu0 0.0
    %332 = vmatpush1.msra.mxu0 0.0
    %333 = vmatprep.subr.mxu0 0.0
    %334 = vmatpush1.msra.mxu0 0.0
    %335 = vmatprep.subr.mxu0 0.0
    %336 = vmatpush1.msra.mxu0 0.0
    %337 = vmatprep.subr.mxu0 0.0
    %338 = vmatpush1.msra.mxu0 0.0
    %339 = vmatprep.subr.mxu0 0.0
    %340 = vmatpush1.msra.mxu0 0.0
    %341 = vmatprep.subr.mxu0 0.0
    %342 = vmatpush1.msra.mxu0 0.0
    %343 = vmatprep.subr.mxu0 0.0
    %344 = vmatpush1.msra.mxu0 0.0
    %345 = vmatprep.subr.mxu0 0.0
    %346 = vmatpush1.msra.mxu0 0.0
    %347 = vmatprep.subr.mxu0 0.0
    %348 = vmatpush1.msra.mxu0 0.0
    %349 = vmatprep.subr.mxu0 0.0
    %350 = vmatpush1.msra.mxu0 0.0
    %351 = vmatprep.subr.mxu0 0.0
    %352 = vmatpush1.msra.mxu0 0.0
    %353 = vmatprep.subr.mxu0 0.0
    %354 = vmatpush1.msra.mxu0 0.0
    %355 = vmatprep.mubr.f32.mxu0 0.0
    %356 = vmatmul.mubr.f32.gmra.mrb[0].mxu0 %v289
    %v357 = vpop.f32.mrb[0].mxu0
    %v358 = vadd.f32 %v285, %v357
    %v359 = vpop.f32.mrb[0].mxu0
    %360 = vdwg.mxu0
    %v361 = vmax.f32 %v358, 0.0
    %v362 = vld [vmem:[%s6] sm:$0xff]
    %v363 = vld [vmem:[%s6 + $0x8] sm:$0xff]
    %v364 = vld [vmem:[%s6 + $0x10] sm:$0xff]
    %v365 = vld [vmem:[%s6 + $0x18] sm:$0xff]
    %v366 = vld [vmem:[%s7] sm:$0x1]
    %v368 = vlaneseq
    %v369 = vshrl.u32 %v368, 7
    %v370 = vsub.s32 0, %v369
    %v371 = vrot.slane %v366, %v370
    %v374 = vsel %vm287, %v361, 0
    %376 = vmatprep.subr.mxu0 0.0
    %377 = vmatpush1.msra.mxu0 %v362
    %378 = vmatprep.subr.mxu0 0.0
    %379 = vmatpush1.msra.mxu0 %v363
    %380 = vmatprep.subr.mxu0 0.0
    %381 = vmatpush1.msra.mxu0 %v364
    %382 = vmatprep.subr.mxu0 0.0
    %383 = vmatpush1.msra.mxu0 %v365
    %384 = vmatprep.subr.mxu0 0.0
    %385 = vmatpush1.msra.mxu0 0.0
    %386 = vmatprep.subr.mxu0 0.0
    %387 = vmatpush1.msra.mxu0 0.0
    %388 = vmatprep.subr.mxu0 0.0
    %389 = vmatpush1.msra.mxu0 0.0
    %390 = vmatprep.subr.mxu0 0.0
    %391 = vmatpush1.msra.mxu0 0.0
    %392 = vmatprep.subr.mxu0 0.0
    %393 = vmatpush1.msra.mxu0 0.0
    %394 = vmatprep.subr.mxu0 0.0
    %395 = vmatpush1.msra.mxu0 0.0
    %396 = vmatprep.subr.mxu0 0.0
    %397 = vmatpush1.msra.mxu0 0.0
    %398 = vmatprep.subr.mxu0 0.0
    %399 = vmatpush1.msra.mxu0 0.0
    %400 = vmatprep.subr.mxu0 0.0
    %401 = vmatpush1.msra.mxu0 0.0
    %402 = vmatprep.subr.mxu0 0.0
    %403 = vmatpush1.msra.mxu0 0.0
    %404 = vmatprep.subr.mxu0 0.0
    %405 = vmatpush1.msra.mxu0 0.0
    %406 = vmatprep.subr.mxu0 0.0
    %407 = vmatpush1.msra.mxu0 0.0
    %408 = vmatprep.subr.mxu0 0.0
    %409 = vmatpush1.msra.mxu0 0.0
    %410 = vmatprep.subr.mxu0 0.0
    %411 = vmatpush1.msra.mxu0 0.0
    %412 = vmatprep.subr.mxu0 0.0
    %413 = vmatpush1.msra.mxu0 0.0
    %414 = vmatprep.subr.mxu0 0.0
    %415 = vmatpush1.msra.mxu0 0.0
    %416 = vmatprep.subr.mxu0 0.0
    %417 = vmatpush1.msra.mxu0 0.0
    %418 = vmatprep.subr.mxu0 0.0
    %419 = vmatpush1.msra.mxu0 0.0
    %420 = vmatprep.subr.mxu0 0.0
    %421 = vmatpush1.msra.mxu0 0.0
    %422 = vmatprep.subr.mxu0 0.0
    %423 = vmatpush1.msra.mxu0 0.0
    %424 = vmatprep.subr.mxu0 0.0
    %425 = vmatpush1.msra.mxu0 0.0
    %426 = vmatprep.subr.mxu0 0.0
    %427 = vmatpush1.msra.mxu0 0.0
    %428 = vmatprep.subr.mxu0 0.0
    %429 = vmatpush1.msra.mxu0 0.0
    %430 = vmatprep.subr.mxu0 0.0
    %431 = vmatpush1.msra.mxu0 0.0
    %432 = vmatprep.subr.mxu0 0.0
    %433 = vmatpush1.msra.mxu0 0.0
    %434 = vmatprep.subr.mxu0 0.0
    %435 = vmatpush1.msra.mxu0 0.0
    %436 = vmatprep.subr.mxu0 0.0
    %437 = vmatpush1.msra.mxu0 0.0
    %438 = vmatprep.subr.mxu0 0.0
    %439 = vmatpush1.msra.mxu0 0.0
    %440 = vmatprep.mubr.f32.mxu0 0.0
    %441 = vmatmul.mubr.f32.gmra.mrb[0].mxu0 %v374
    %v442 = vpop.f32.mrb[0].mxu0
    %v443 = vadd.f32 %v371, %v442
    %v444 = vpop.f32.mrb[0].mxu0
    %445 = vdwg.mxu0
    %v446 = vmax.f32 %v443, 0.0
    %vm447 = vcmask 254976
    %448 = vst.msk [vmem:[#allocation2] sm:$0x3] %vm447, %v446
    // Predicated region
    $region34: #{tpu_custom_call.1} parent=1 // pred_check
      _
    $region35: #{tpu_custom_call.1} parent=1 // pred_check_branch
      %450 = sbr.rel (0) target = $region37
    $region36: #{tpu_custom_call.1} parent=1 // pred_region
      %s452 = ssub.s32 32, 32
      %453 = vsyncadd [#allocation3], %s452
      %s455 = sshll.u32 [#allocation2], 4
      %s456 = int_to_ptr.vmem [resolvable:$true] %s455
      %458 = dma.vmem_to_hbm [thread:$0]  %s456, 32, %s8, [#allocation3]
    $region37: #{tpu_custom_call.1} parent=1 // pred_fallthru
      _
    // Predicated region
    $region38: #{tpu_custom_call.1} parent=1 // pred_check
      _
    $region39: #{tpu_custom_call.1} parent=1 // pred_check_branch
      %460 = sbr.rel (0) target = $region41
    $region40: #{tpu_custom_call.1} parent=1 // pred_region
      %461 = dma.done [#allocation3], 32
    $region41: #{tpu_custom_call.1} parent=1 // pred_fallthru
      _
    %462 = vsyncpa [#allocation3], 1

</llo_original>
